<compile_context>
chip_gen: v7x
topology: tpu7x:2x2x1
jax: 0.10.0
libtpu: 0.0.40
codegen_flags: <defaults>
</compile_context>

<pallas_src>
import math

import jax
import jax.numpy as jnp
import numpy as np
from jax.experimental import pallas as pl
from jax.experimental.pallas import tpu as pltpu


# --------------------------- small shape helpers ----------------------------

def _round_up(x: int, m: int) -> int:
    return ((x + m - 1) // m) * m


def _choose_tile(padded_dim: int, align: int, cap: int) -> int:
    """Largest multiple of `align` that evenly divides `padded_dim` and is <= cap.

    Never inflates the padded dim beyond its alignment round-up (avoids the
    up-to-2x wasted HBM/MXU work of rounding a dim up to a cap-sized tile on
    unlucky shapes like in_f=640 or B=264)."""
    best = align
    t = align
    limit = min(padded_dim, cap)
    while t <= limit:
        if padded_dim % t == 0:
            best = t
        t += align
    return best


# ------------------------- one-time parameter prep --------------------------

def prepare_noisy_linear(params, compute_dtype=jnp.float32):
    """One-time relayout of NoisyLinear parameters for the Pallas kernel.

    Call at init / after reset_noise() / after an optimizer step, NOT per
    forward.  Pads + transposes the weights to [Kp, Np] (lane-dense output),
    folds eps_out into the sigma weight columns, and fuses the noisy bias.
    weight_epsilon = outer(eps_out, eps_in) is never materialized."""
    out_f, in_f = params["weight_mu"].shape
    Kp = _round_up(in_f, 128)
    Np = _round_up(out_f, 128)
    cd = compute_dtype

    def pad2(a, rows, cols):
        a = a.astype(cd)
        return jnp.pad(a, ((0, rows - a.shape[0]), (0, cols - a.shape[1])))

    eps_out = params["eps_out"]
    wmu_t = pad2(params["weight_mu"].T, Kp, Np)                             # [Kp, Np]
    # sigma path: (x * eps_in) @ (weight_sigma.T * eps_out[None, :])
    wsig_eo_t = pad2((params["weight_sigma"] * eps_out[:, None]).T, Kp, Np)  # [Kp, Np]
    eps_in = pad2(params["eps_in"].reshape(1, -1), 1, Kp)                    # [1, Kp]
    bias_train = pad2((params["bias_mu"]
                       + params["bias_sigma"] * params["bias_epsilon"]
                       ).reshape(1, -1), 1, Np)                              # [1, Np]
    bias_eval = pad2(params["bias_mu"].reshape(1, -1), 1, Np)                # [1, Np]

    return {
        "in_features": in_f, "out_features": out_f,
        "Kp": Kp, "Np": Np, "dtype": cd,
        "weight_mu_t": wmu_t, "weight_sigma_eo_t": wsig_eo_t,
        "eps_in": eps_in, "bias_train": bias_train, "bias_eval": bias_eval,
    }


# ----------------------------- Pallas kernels ------------------------------

def _noisy_linear_train_kernel(x_ref, ei_ref, wmu_ref, wsig_ref, b_ref,
                               o_ref, acc_ref):
    """Grid = (M tiles, N tiles, K tiles); K (reduction) is last / resident-acc."""
    k = pl.program_id(2)

    @pl.when(k == 0)
    def _init():
        acc_ref[...] = jnp.zeros_like(acc_ref)

    x = x_ref[...]                              # (TM, TK) compute dtype
    ei = ei_ref[pl.ds(k, 1), :]                 # (1, TK) slice of resident eps_in
    # mu path + factorized sigma path (eps_out was pre-folded into wsig columns).
    acc_ref[...] += (
        jnp.dot(x, wmu_ref[...], preferred_element_type=jnp.float32)
        + jnp.dot(x * ei, wsig_ref[...], preferred_element_type=jnp.float32))

    @pl.when(k == pl.num_programs(2) - 1)
    def _finalize():
        o_ref[...] = (acc_ref[...]
                      + b_ref[...].astype(jnp.float32)).astype(o_ref.dtype)


def _noisy_linear_eval_kernel(x_ref, wmu_ref, b_ref, o_ref, acc_ref):
    k = pl.program_id(2)

    @pl.when(k == 0)
    def _init():
        acc_ref[...] = jnp.zeros_like(acc_ref)

    acc_ref[...] += jnp.dot(x_ref[...], wmu_ref[...],
                            preferred_element_type=jnp.float32)

    @pl.when(k == pl.num_programs(2) - 1)
    def _finalize():
        o_ref[...] = (acc_ref[...]
                      + b_ref[...].astype(jnp.float32)).astype(o_ref.dtype)


# ------------------------------ Python wrapper ------------------------------

def noisy_linear_forward(x, prepared, training: bool = True,
                         tm_cap: int = 512, tk_cap: int = 2048, tn_cap: int = 512,
                         vmem_limit_bytes: int = 48 * 1024 * 1024):
    """x: [B, in_features] -> [B, out_features] float32."""
    B, in_f = x.shape
    assert in_f == prepared["in_features"]
    Kp, Np = prepared["Kp"], prepared["Np"]
    out_f = prepared["out_features"]
    cd = prepared["dtype"]

    Bp = _round_up(B, 8)
    TM = _choose_tile(Bp, 8, tm_cap)     # cover the whole batch in one M tile when possible
    TK = _choose_tile(Kp, 128, tk_cap)
    TN = _choose_tile(Np, 128, tn_cap)

    # v7x megacore: guarantee >= 2 "parallel" (i, j) tiles so both TensorCores
    # get work; neutral on single-TC v5e/v6e.
    if (Bp // TM) * (Np // TN) == 1 and Np % 256 == 0:
        TN = Np // 2

    grid = (Bp // TM, Np // TN, Kp // TK)
    nK = Kp // TK

    # Per-call work is only the (cheap) activation pad; the weights were padded,
    # transposed and noise-folded once in prepare_noisy_linear().
    xp = jnp.pad(x.astype(cd), ((0, Bp - B), (0, Kp - in_f)))

    x_spec = pl.BlockSpec((TM, TK), lambda i, j, k: (i, k))
    w_spec = pl.BlockSpec((TK, TN), lambda i, j, k: (k, j))
    b_spec = pl.BlockSpec((1, TN), lambda i, j, k: (0, j))
    out_spec = pl.BlockSpec((TM, TN), lambda i, j, k: (i, j))

    compiler_params = pltpu.CompilerParams(
        dimension_semantics=("parallel", "parallel", "arbitrary"),
        vmem_limit_bytes=vmem_limit_bytes,
    )
    out_shape = jax.ShapeDtypeStruct((Bp, Np), jnp.float32)
    scratch = [pltpu.VMEM((TM, TN), jnp.float32)]

    if training:
        # eps_in is DMA'd once and stays resident (constant block index); the
        # kernel slices row k -> no per-K-step vector DMA.
        ei_blocks = prepared["eps_in"].reshape(nK, TK)
        ei_spec = pl.BlockSpec((nK, TK), lambda i, j, k: (0, 0))

        yp = pl.pallas_call(
            _noisy_linear_train_kernel,
            out_shape=out_shape,
            grid_spec=pltpu.PrefetchScalarGridSpec(
                num_scalar_prefetch=0,
                grid=grid,
                in_specs=[x_spec, ei_spec, w_spec, w_spec, b_spec],
                out_specs=out_spec,
                scratch_shapes=scratch,
            ),
            compiler_params=compiler_params,
        )(xp, ei_blocks, prepared["weight_mu_t"],
          prepared["weight_sigma_eo_t"], prepared["bias_train"])
    else:
        yp = pl.pallas_call(
            _noisy_linear_eval_kernel,
            out_shape=out_shape,
            grid_spec=pltpu.PrefetchScalarGridSpec(
                num_scalar_prefetch=0,
                grid=grid,
                in_specs=[x_spec, w_spec, b_spec],
                out_specs=out_spec,
                scratch_shapes=scratch,
            ),
            compiler_params=compiler_params,
        )(xp, prepared["weight_mu_t"], prepared["bias_eval"])

    return yp[:B, :out_f]


# ------------------------ Deterministic parameter init ----------------------

def _scale_noise(key, size):
    x = jax.random.normal(key, (size,), dtype=jnp.float32)
    return jnp.sign(x) * jnp.sqrt(jnp.abs(x))


def init_noisy_linear(key, in_features, out_features, sigma_init=0.5):
    k_wmu, k_bmu, k_ein, k_eout = jax.random.split(key, 4)
    mu_range = 1.0 / math.sqrt(in_features)

    weight_mu = jax.random.uniform(
        k_wmu, (out_features, in_features), jnp.float32,
        minval=-mu_range, maxval=mu_range)
    weight_sigma = jnp.full((out_features, in_features),
                            sigma_init / math.sqrt(in_features), jnp.float32)
    bias_mu = jax.random.uniform(
        k_bmu, (out_features,), jnp.float32, minval=-mu_range, maxval=mu_range)
    bias_sigma = jnp.full((out_features,),
                          sigma_init / math.sqrt(out_features), jnp.float32)

    eps_in = _scale_noise(k_ein, in_features)
    eps_out = _scale_noise(k_eout, out_features)

    return {
        "weight_mu": weight_mu, "weight_sigma": weight_sigma,
        "bias_mu": bias_mu, "bias_sigma": bias_sigma,
        "eps_in": eps_in, "eps_out": eps_out, "bias_epsilon": eps_out,
    }


# ------------------------------- references ---------------------------------

def _reference_forward(x, params, training):
    """float64 numpy ground truth, exactly the PyTorch module's math."""
    xs = np.asarray(x, dtype=np.float64)
    wmu = np.asarray(params["weight_mu"], dtype=np.float64)
    bmu = np.asarray(params["bias_mu"], dtype=np.float64)
    if training:
        wsig = np.asarray(params["weight_sigma"], dtype=np.float64)
        bsig = np.asarray(params["bias_sigma"], dtype=np.float64)
        ei = np.asarray(params["eps_in"], dtype=np.float64)
        eo = np.asarray(params["eps_out"], dtype=np.float64)
        beps = np.asarray(params["bias_epsilon"], dtype=np.float64)
        w = wmu + wsig * np.outer(eo, ei)
        b = bmu + bsig * beps
    else:
        w, b = wmu, bmu
    return xs @ w.T + b


# ----------------------------------- main -----------------------------------

if __name__ == "__main__":
    def run_case(key, B, in_f, out_f, compute_dtype, atol, rtol, check_eval=True):
        k_params, k_x = jax.random.split(key)
        params = init_noisy_linear(k_params, in_f, out_f, sigma_init=0.5)
        x = jax.random.normal(k_x, (B, in_f), dtype=jnp.float32)
        prepared = prepare_noisy_linear(params, compute_dtype=compute_dtype)

        y = jax.block_until_ready(noisy_linear_forward(x, prepared, training=True))
        assert y.shape == (B, out_f)
        ref = _reference_forward(x, params, training=True)
        assert np.allclose(np.asarray(y, np.float64), ref, atol=atol, rtol=rtol), \
            f"train mismatch B={B} in={in_f} out={out_f}"

        if check_eval:
            y_e = jax.block_until_ready(
                noisy_linear_forward(x, prepared, training=False))
            ref_e = _reference_forward(x, params, training=False)
            assert np.allclose(np.asarray(y_e, np.float64), ref_e,
                               atol=atol, rtol=rtol), \
                f"eval mismatch B={B} in={in_f} out={out_f}"

    root = jax.random.PRNGKey(0)
    k0, k1, k2, k3 = jax.random.split(root, 4)

    # 1) Small shape (single-tile (1,1,1) grid), f32.
    run_case(k0, B=8, in_f=32, out_f=64, compute_dtype=jnp.float32,
             atol=2e-4, rtol=2e-4)

    # 2) Multi-tile grid: exercises pl.when init/finalize across the K reduction
    #    and multiple M tiles (grid = (2, 1, 2) with TM=512, TK=1280).
    run_case(k1, B=1024, in_f=2560, out_f=512, compute_dtype=jnp.float32,
             atol=2e-3, rtol=2e-3)

    # 3) Grid that would collapse to one (i, j) tile: forces the v7x
    #    two-TensorCore N split (grid = (1, 2, 1)).
    run_case(k2, B=8, in_f=256, out_f=512, compute_dtype=jnp.float32,
             atol=5e-4, rtol=5e-4)

    # 4) bf16 weights/activations (halves HBM weight bytes), f32 accumulation.
    run_case(k3, B=8, in_f=32, out_f=64, compute_dtype=jnp.bfloat16,
             atol=5e-2, rtol=5e-2, check_eval=False)

    print("KERNEL_OK")
</pallas_src>

<mosaic_0001>
module attributes {stable_mosaic.version = 11 : i64} {
  func.func @_noisy_linear_train_kernel(%arg0: i32, %arg1: i32, %arg2: i32, %arg3: memref<8x128xf32, #tpu.memory_space<vmem>>, %arg4: memref<1x128xf32, #tpu.memory_space<vmem>>, %arg5: memref<128x128xf32, #tpu.memory_space<vmem>>, %arg6: memref<128x128xf32, #tpu.memory_space<vmem>>, %arg7: memref<1x128xf32, #tpu.memory_space<vmem>>, %arg8: memref<8x128xf32, #tpu.memory_space<vmem>>, %arg9: memref<8x128xf32, #tpu.memory_space<vmem>>) attributes {dimension_semantics = [#tpu.dimension_semantics<parallel>, #tpu.dimension_semantics<parallel>, #tpu.dimension_semantics<arbitrary>], iteration_bounds = array<i64: 1, 1, 1>, scalar_prefetch = 0 : i64, scratch_operands = 1 : i64, tpu.core_type = #tpu.core_type<tc>, window_params = [{transform_indices = @transform_0, window_bounds = array<i64: 8, 128>}, {pipeline_mode = #tpu.pipeline_mode<synchronous>, transform_indices = @transform_1, window_bounds = array<i64: 1, 128>}, {transform_indices = @transform_2, window_bounds = array<i64: 128, 128>}, {transform_indices = @transform_3, window_bounds = array<i64: 128, 128>}, {transform_indices = @transform_4, window_bounds = array<i64: 1, 128>}, {transform_indices = @transform_5, window_bounds = array<i64: 8, 128>}]} {
    %c0_i32 = arith.constant 0 : i32
    %0 = arith.cmpi eq, %arg2, %c0_i32 : i32
    %1 = arith.extui %0 : i1 to i32
    %c0_i32_0 = arith.constant 0 : i32
    %2 = arith.cmpi ne, %1, %c0_i32_0 : i32
    scf.if %2 {
      %cst_14 = arith.constant 0.000000e+00 : f32
      %19 = vector.broadcast %cst_14 : f32 to vector<8x128xf32>
      %c0_15 = arith.constant 0 : index
      %c0_16 = arith.constant 0 : index
      %20 = vector.load %arg9[%c0_15, %c0_16] : memref<8x128xf32, #tpu.memory_space<vmem>>, vector<8x128xf32>
      tpu.vector_store %arg9[%c0_15, %c0_16], %19 {strides = array<i32>} : memref<8x128xf32, #tpu.memory_space<vmem>>, vector<8x128xf32>,
    } else {
    }
    %c0 = arith.constant 0 : index
    %c0_1 = arith.constant 0 : index
    %3 = vector.load %arg3[%c0, %c0_1] : memref<8x128xf32, #tpu.memory_space<vmem>>, vector<8x128xf32>
    %4 = arith.index_cast %arg2 : i32 to index
    %c0_2 = arith.constant 0 : index
    %5 = vector.load %arg4[%4, %c0_2] : memref<1x128xf32, #tpu.memory_space<vmem>>, vector<1x128xf32>
    %c0_3 = arith.constant 0 : index
    %c0_4 = arith.constant 0 : index
    %6 = vector.load %arg9[%c0_3, %c0_4] : memref<8x128xf32, #tpu.memory_space<vmem>>, vector<8x128xf32>
    %c0_5 = arith.constant 0 : index
    %c0_6 = arith.constant 0 : index
    %7 = vector.load %arg5[%c0_5, %c0_6] : memref<128x128xf32, #tpu.memory_space<vmem>>, vector<128x128xf32>
    %cst = arith.constant dense<0.000000e+00> : vector<8x128xf32>
    %8 = tpu.matmul %3, %7, %cst {dimension_numbers = #tpu.dot_dimension_numbers<[1], [0], [0], [1], [0, 0, 1, 1], [], []>} : vector<8x128xf32>, vector<128x128xf32>, vector<8x128xf32> -> vector<8x128xf32>
    %9 = vector.broadcast %5 : vector<1x128xf32> to vector<8x128xf32>
    %10 = arith.mulf %3, %9 : vector<8x128xf32>
    %c0_7 = arith.constant 0 : index
    %c0_8 = arith.constant 0 : index
    %11 = vector.load %arg6[%c0_7, %c0_8] : memref<128x128xf32, #tpu.memory_space<vmem>>, vector<128x128xf32>
    %cst_9 = arith.constant dense<0.000000e+00> : vector<8x128xf32>
    %12 = tpu.matmul %10, %11, %cst_9 {dimension_numbers = #tpu.dot_dimension_numbers<[1], [0], [0], [1], [0, 0, 1, 1], [], []>} : vector<8x128xf32>, vector<128x128xf32>, vector<8x128xf32> -> vector<8x128xf32>
    %13 = arith.addf %8, %12 : vector<8x128xf32>
    %14 = arith.addf %6, %13 : vector<8x128xf32>
    %c0_10 = arith.constant 0 : index
    %c0_11 = arith.constant 0 : index
    %15 = vector.load %arg9[%c0_10, %c0_11] : memref<8x128xf32, #tpu.memory_space<vmem>>, vector<8x128xf32>
    tpu.vector_store %arg9[%c0_10, %c0_11], %14 {strides = array<i32>} : memref<8x128xf32, #tpu.memory_space<vmem>>, vector<8x128xf32>,
    %c0_i32_12 = arith.constant 0 : i32
    %16 = arith.cmpi eq, %arg2, %c0_i32_12 : i32
    %17 = arith.extui %16 : i1 to i32
    %c0_i32_13 = arith.constant 0 : i32
    %18 = arith.cmpi ne, %17, %c0_i32_13 : i32
    scf.if %18 {
      %c0_14 = arith.constant 0 : index
      %c0_15 = arith.constant 0 : index
      %19 = vector.load %arg9[%c0_14, %c0_15] : memref<8x128xf32, #tpu.memory_space<vmem>>, vector<8x128xf32>
      %c0_16 = arith.constant 0 : index
      %c0_17 = arith.constant 0 : index
      %20 = vector.load %arg7[%c0_16, %c0_17] : memref<1x128xf32, #tpu.memory_space<vmem>>, vector<1x128xf32>
      %21 = vector.broadcast %20 : vector<1x128xf32> to vector<8x128xf32>
      %22 = arith.addf %19, %21 : vector<8x128xf32>
      %c0_18 = arith.constant 0 : index
      %c0_19 = arith.constant 0 : index
      %23 = vector.load %arg8[%c0_18, %c0_19] : memref<8x128xf32, #tpu.memory_space<vmem>>, vector<8x128xf32>
      tpu.vector_store %arg8[%c0_18, %c0_19], %22 {strides = array<i32>} : memref<8x128xf32, #tpu.memory_space<vmem>>, vector<8x128xf32>,
    } else {
    }
    return
  }
  func.func @transform_0(%arg0: i32, %arg1: i32, %arg2: i32) -> (i32, i32) {
    %c0_i32 = arith.constant 0 : i32
    return %arg0, %arg2 : i32, i32
  }
  func.func @transform_1(%arg0: i32, %arg1: i32, %arg2: i32) -> (i32, i32) {
    %c0_i32 = arith.constant 0 : i32
    %c0_i32_0 = arith.constant 0 : i32
    %c0_i32_1 = arith.constant 0 : i32
    return %c0_i32, %c0_i32_0 : i32, i32
  }
  func.func @transform_2(%arg0: i32, %arg1: i32, %arg2: i32) -> (i32, i32) {
    %c0_i32 = arith.constant 0 : i32
    return %arg2, %arg1 : i32, i32
  }
  func.func @transform_3(%arg0: i32, %arg1: i32, %arg2: i32) -> (i32, i32) {
    %c0_i32 = arith.constant 0 : i32
    return %arg2, %arg1 : i32, i32
  }
  func.func @transform_4(%arg0: i32, %arg1: i32, %arg2: i32) -> (i32, i32) {
    %c0_i32 = arith.constant 0 : i32
    %c0_i32_0 = arith.constant 0 : i32
    return %c0_i32, %arg1 : i32, i32
  }
  func.func @transform_5(%arg0: i32, %arg1: i32, %arg2: i32) -> (i32, i32) {
    %c0_i32 = arith.constant 0 : i32
    return %arg0, %arg1 : i32, i32
  }
}

</mosaic_0001>

<llo_original>
// kernel: tpu_custom_call.1
$region0: #{tpu_custom_call.1}
  #allocation0 [shape = 'u32[]', space=smem, size = 0x4, offset = 0x4, fixed_abs, tag = 'smem constant byte address 0x4 - core index']
  #allocation1 [shape = 'u32[144,128]{1,0:T(1,128)}', space=vmem, size = 0x12000, scoped, tag = 'internal scratch']
  #allocation2 [shape = 'f32[8,128]{1,0:T(8,128)}', space=vmem, size = 0x1000, scoped, tag = 'scratch operand']
  %s0 = inlined_call_operand.hbm [shape: f32[8,128], index: 0, kind: input, shape index: {}]
  %s1 = inlined_call_operand.vmem [shape: f32[1,128], index: 1, kind: input, shape index: {}]
  %s2 = inlined_call_operand.hbm [shape: f32[128,128], index: 2, kind: input, shape index: {}]
  %s3 = inlined_call_operand.hbm [shape: f32[128,128], index: 3, kind: input, shape index: {}]
  %s4 = inlined_call_operand.vmem [shape: f32[1,128], index: 4, kind: input, shape index: {}]
  %s5 = inlined_call_operand.hbm [shape: f32[8,128], index: 5, kind: output, shape index: {}]
  %s6 = sld [smem:[#allocation0]]
  $region50: #{tpu_custom_call.1} parent=0
    _
  %s8 = ssub.s32 1, %s6
  %s9 = scalar_select 0, %s8, %s6
  $region1: #{tpu_custom_call.1} parent=0
    #allocation3 [shape = 'u8[4096]{0}', space=vmem, size = 0x1000, scoped, tag = 'input window, operand 0, single buffered']
    #allocation4 [shape = 's32[1]{0}', space=sflag, size = 0x4, scoped, tag = 'scoped memory for tpu_custom_call.1']
    #allocation5 [shape = 's32[1]{0}', space=sflag, size = 0x4, scoped, tag = 'scoped memory for tpu_custom_call.1']
    #allocation6 [shape = 'u8[65536]{0}', space=vmem, size = 0x10000, scoped, tag = 'input window, operand 2, single buffered']
    #allocation7 [shape = 's32[1]{0}', space=sflag, size = 0x4, scoped, tag = 'scoped memory for tpu_custom_call.1']
    #allocation8 [shape = 'u8[65536]{0}', space=vmem, size = 0x10000, scoped, tag = 'input window, operand 3, single buffered']
    #allocation9 [shape = 'u8[4096]{0}', space=vmem, size = 0x1000, scoped, tag = 'output window, operand 0, single buffered']
    %10 = vsyncpa [#allocation4], 0
    %11 = vsyncpa [#allocation7], 0
    %12 = vsyncpa [#allocation5], 0
    // Predicated region
    $region2: #{tpu_custom_call.1} parent=1 // pred_check
      _
    $region3: #{tpu_custom_call.1} parent=1 // pred_check_branch
      %14 = sbr.rel (0) target = $region5
    $region4: #{tpu_custom_call.1} parent=1 // pred_region
      %s16 = ssub.s32 128, 128
      %17 = vsyncadd [#allocation4], %s16
      %s19 = sshll.u32 [#allocation3], 4
      %s20 = int_to_ptr.vmem [resolvable:$true] %s19
      %22 = dma.hbm_to_vmem [thread:$0]  %s0, 128, %s20, [#allocation4]
    $region5: #{tpu_custom_call.1} parent=1 // pred_fallthru
      _
    // Predicated region
    $region6: #{tpu_custom_call.1} parent=1 // pred_check
      _
    $region7: #{tpu_custom_call.1} parent=1 // pred_check_branch
      %24 = sbr.rel (0) target = $region9
    $region8: #{tpu_custom_call.1} parent=1 // pred_region
      _
    $region9: #{tpu_custom_call.1} parent=1 // pred_fallthru
      _
    // Predicated region
    $region10: #{tpu_custom_call.1} parent=1 // pred_check
      _
    $region11: #{tpu_custom_call.1} parent=1 // pred_check_branch
      %26 = sbr.rel (0) target = $region13
    $region12: #{tpu_custom_call.1} parent=1 // pred_region
      %s28 = ssub.s32 2048, 2048
      %29 = vsyncadd [#allocation7], %s28
      %s30 = sshll.u32 [#allocation6], 4
      %s31 = int_to_ptr.vmem [resolvable:$true] %s30
      %36 = dma.hbm_to_vmem [thread:$0]  %s2, 2048, %s31, [#allocation7], 128, 128, 8
    $region13: #{tpu_custom_call.1} parent=1 // pred_fallthru
      _
    // Predicated region
    $region14: #{tpu_custom_call.1} parent=1 // pred_check
      _
    $region15: #{tpu_custom_call.1} parent=1 // pred_check_branch
      %38 = sbr.rel (0) target = $region17
    $region16: #{tpu_custom_call.1} parent=1 // pred_region
      %s40 = ssub.s32 2048, 2048
      %41 = vsyncadd [#allocation7], %s40
      %s42 = sshll.u32 [#allocation8], 4
      %s43 = int_to_ptr.vmem [resolvable:$true] %s42
      %48 = dma.hbm_to_vmem [thread:$0]  %s3, 2048, %s43, [#allocation7], 128, 128, 8
    $region17: #{tpu_custom_call.1} parent=1 // pred_fallthru
      _
    // Predicated region
    $region18: #{tpu_custom_call.1} parent=1 // pred_check
      _
    $region19: #{tpu_custom_call.1} parent=1 // pred_check_branch
      %50 = sbr.rel (0) target = $region21
    $region20: #{tpu_custom_call.1} parent=1 // pred_region
      _
    $region21: #{tpu_custom_call.1} parent=1 // pred_fallthru
      _
    // Predicated region
    $region22: #{tpu_custom_call.1} parent=1 // pred_check
      _
    $region23: #{tpu_custom_call.1} parent=1 // pred_check_branch
      %52 = sbr.rel (0) target = $region25
    $region24: #{tpu_custom_call.1} parent=1 // pred_region
      %53 = dma.done [#allocation4], 128
    $region25: #{tpu_custom_call.1} parent=1 // pred_fallthru
      _
    // Predicated region
    $region26: #{tpu_custom_call.1} parent=1 // pred_check
      _
    $region27: #{tpu_custom_call.1} parent=1 // pred_check_branch
      %55 = sbr.rel (0) target = $region29
    $region28: #{tpu_custom_call.1} parent=1 // pred_region
      %56 = dma.done [#allocation7], 2048
    $region29: #{tpu_custom_call.1} parent=1 // pred_fallthru
      _
    // Predicated region
    $region30: #{tpu_custom_call.1} parent=1 // pred_check
      _
    $region31: #{tpu_custom_call.1} parent=1 // pred_check_branch
      %58 = sbr.rel (0) target = $region33
    $region32: #{tpu_custom_call.1} parent=1 // pred_region
      %59 = dma.done [#allocation7], 2048
    $region33: #{tpu_custom_call.1} parent=1 // pred_fallthru
      _
    %p60 = scmp.eq.s32.totalorder 0, 0
    // Predicated region
    $region34: #{tpu_custom_call.1} parent=1 // pred_check
      %p61 = pneg %p60
    $region35: #{tpu_custom_call.1} parent=1 // pred_check_branch
      %63 = sbr.rel (%p61) target = $region37
    $region36: #{tpu_custom_call.1} parent=1 // pred_region
      %64 = vst [vmem:[#allocation2] sm:$0xff] 0.0
    $region37: #{tpu_custom_call.1} parent=1 // pred_fallthru
      _
    %v65 = vld [vmem:[#allocation3] sm:$0xff]
    %v66 = vld [vmem:[%s1] sm:$0x1]
    %v67 = vld [vmem:[#allocation2] sm:$0xff]
    %v68 = vld [vmem:[#allocation6] sm:$0xff]
    %v69 = vld [vmem:[#allocation6 + $0x8] sm:$0xff]
    %v70 = vld [vmem:[#allocation6 + $0x10] sm:$0xff]
    %v71 = vld [vmem:[#allocation6 + $0x18] sm:$0xff]
    %v72 = vld [vmem:[#allocation6 + $0x20] sm:$0xff]
    %v73 = vld [vmem:[#allocation6 + $0x28] sm:$0xff]
    %v74 = vld [vmem:[#allocation6 + $0x30] sm:$0xff]
    %v75 = vld [vmem:[#allocation6 + $0x38] sm:$0xff]
    %v76 = vld [vmem:[#allocation6 + $0x40] sm:$0xff]
    %v77 = vld [vmem:[#allocation6 + $0x48] sm:$0xff]
    %v78 = vld [vmem:[#allocation6 + $0x50] sm:$0xff]
    %v79 = vld [vmem:[#allocation6 + $0x58] sm:$0xff]
    %v80 = vld [vmem:[#allocation6 + $0x60] sm:$0xff]
    %v81 = vld [vmem:[#allocation6 + $0x68] sm:$0xff]
    %v82 = vld [vmem:[#allocation6 + $0x70] sm:$0xff]
    %v83 = vld [vmem:[#allocation6 + $0x78] sm:$0xff]
    %v85 = vlaneseq
    %v86 = vshrl.u32 %v85, 7
    %v87 = vsub.s32 0, %v86
    %v88 = vrot.slane %v66, %v87
    %v90 = vmul.f32 %v65, %v88
    %v91 = vld [vmem:[#allocation8] sm:$0xff]
    %v92 = vld [vmem:[#allocation8 + $0x8] sm:$0xff]
    %v93 = vld [vmem:[#allocation8 + $0x10] sm:$0xff]
    %v94 = vld [vmem:[#allocation8 + $0x18] sm:$0xff]
    %v95 = vld [vmem:[#allocation8 + $0x20] sm:$0xff]
    %v96 = vld [vmem:[#allocation8 + $0x28] sm:$0xff]
    %v97 = vld [vmem:[#allocation8 + $0x30] sm:$0xff]
    %v98 = vld [vmem:[#allocation8 + $0x38] sm:$0xff]
    %v99 = vld [vmem:[#allocation8 + $0x40] sm:$0xff]
    %v100 = vld [vmem:[#allocation8 + $0x48] sm:$0xff]
    %v101 = vld [vmem:[#allocation8 + $0x50] sm:$0xff]
    %v102 = vld [vmem:[#allocation8 + $0x58] sm:$0xff]
    %v103 = vld [vmem:[#allocation8 + $0x60] sm:$0xff]
    %v104 = vld [vmem:[#allocation8 + $0x68] sm:$0xff]
    %v105 = vld [vmem:[#allocation8 + $0x70] sm:$0xff]
    %v106 = vld [vmem:[#allocation8 + $0x78] sm:$0xff]
    %107 = vmatprep.subr.mxu0 0.0
    %108 = vmatpush1.msra.mxu0 %v91
    %109 = vmatprep.subr.mxu0 0.0
    %110 = vmatpush1.msra.mxu0 %v92
    %111 = vmatprep.subr.mxu0 0.0
    %112 = vmatpush1.msra.mxu0 %v93
    %113 = vmatprep.subr.mxu0 0.0
    %114 = vmatpush1.msra.mxu0 %v94
    %115 = vmatprep.subr.mxu0 0.0
    %116 = vmatpush1.msra.mxu0 %v95
    %117 = vmatprep.subr.mxu0 0.0
    %118 = vmatpush1.msra.mxu0 %v96
    %119 = vmatprep.subr.mxu0 0.0
    %120 = vmatpush1.msra.mxu0 %v97
    %121 = vmatprep.subr.mxu0 0.0
    %122 = vmatpush1.msra.mxu0 %v98
    %123 = vmatprep.subr.mxu0 0.0
    %124 = vmatpush1.msra.mxu0 %v99
    %125 = vmatprep.subr.mxu0 0.0
    %126 = vmatpush1.msra.mxu0 %v100
    %127 = vmatprep.subr.mxu0 0.0
    %128 = vmatpush1.msra.mxu0 %v101
    %129 = vmatprep.subr.mxu0 0.0
    %130 = vmatpush1.msra.mxu0 %v102
    %131 = vmatprep.subr.mxu0 0.0
    %132 = vmatpush1.msra.mxu0 %v103
    %133 = vmatprep.subr.mxu0 0.0
    %134 = vmatpush1.msra.mxu0 %v104
    %135 = vmatprep.subr.mxu0 0.0
    %136 = vmatpush1.msra.mxu0 %v105
    %137 = vmatprep.subr.mxu0 0.0
    %138 = vmatpush1.msra.mxu0 %v106
    %139 = vmatprep.subr.mxu0 0.0
    %140 = vmatpush1.msra.mxu0 0.0
    %141 = vmatprep.subr.mxu0 0.0
    %142 = vmatpush1.msra.mxu0 0.0
    %143 = vmatprep.subr.mxu0 0.0
    %144 = vmatpush1.msra.mxu0 0.0
    %145 = vmatprep.subr.mxu0 0.0
    %146 = vmatpush1.msra.mxu0 0.0
    %147 = vmatprep.subr.mxu0 0.0
    %148 = vmatpush1.msra.mxu0 0.0
    %149 = vmatprep.subr.mxu0 0.0
    %150 = vmatpush1.msra.mxu0 0.0
    %151 = vmatprep.subr.mxu0 0.0
    %152 = vmatpush1.msra.mxu0 0.0
    %153 = vmatprep.subr.mxu0 0.0
    %154 = vmatpush1.msra.mxu0 0.0
    %155 = vmatprep.subr.mxu0 0.0
    %156 = vmatpush1.msra.mxu0 0.0
    %157 = vmatprep.subr.mxu0 0.0
    %158 = vmatpush1.msra.mxu0 0.0
    %159 = vmatprep.subr.mxu0 0.0
    %160 = vmatpush1.msra.mxu0 0.0
    %161 = vmatprep.subr.mxu0 0.0
    %162 = vmatpush1.msra.mxu0 0.0
    %163 = vmatprep.subr.mxu0 0.0
    %164 = vmatpush1.msra.mxu0 0.0
    %165 = vmatprep.subr.mxu0 0.0
    %166 = vmatpush1.msra.mxu0 0.0
    %167 = vmatprep.subr.mxu0 0.0
    %168 = vmatpush1.msra.mxu0 0.0
    %169 = vmatprep.subr.mxu0 0.0
    %170 = vmatpush1.msra.mxu0 0.0
    %171 = vmatprep.mubr.f32.mxu0 0.0
    %172 = vmatmul.mubr.f32.gmra.mrb[0].mxu0 %v90
    %v173 = vpop.f32.mrb[0].mxu0
    %v174 = vadd.f32 0.0, %v173
    %v175 = vpop.f32.mrb[0].mxu0
    %176 = vdwg.mxu0
    %177 = vmatprep.subr.mxu0 0.0
    %178 = vmatpush1.msra.mxu0 %v68
    %179 = vmatprep.subr.mxu0 0.0
    %180 = vmatpush1.msra.mxu0 %v69
    %181 = vmatprep.subr.mxu0 0.0
    %182 = vmatpush1.msra.mxu0 %v70
    %183 = vmatprep.subr.mxu0 0.0
    %184 = vmatpush1.msra.mxu0 %v71
    %185 = vmatprep.subr.mxu0 0.0
    %186 = vmatpush1.msra.mxu0 %v72
    %187 = vmatprep.subr.mxu0 0.0
    %188 = vmatpush1.msra.mxu0 %v73
    %189 = vmatprep.subr.mxu0 0.0
    %190 = vmatpush1.msra.mxu0 %v74
    %191 = vmatprep.subr.mxu0 0.0
    %192 = vmatpush1.msra.mxu0 %v75
    %193 = vmatprep.subr.mxu0 0.0
    %194 = vmatpush1.msra.mxu0 %v76
    %195 = vmatprep.subr.mxu0 0.0
    %196 = vmatpush1.msra.mxu0 %v77
    %197 = vmatprep.subr.mxu0 0.0
    %198 = vmatpush1.msra.mxu0 %v78
    %199 = vmatprep.subr.mxu0 0.0
    %200 = vmatpush1.msra.mxu0 %v79
    %201 = vmatprep.subr.mxu0 0.0
    %202 = vmatpush1.msra.mxu0 %v80
    %203 = vmatprep.subr.mxu0 0.0
    %204 = vmatpush1.msra.mxu0 %v81
    %205 = vmatprep.subr.mxu0 0.0
    %206 = vmatpush1.msra.mxu0 %v82
    %207 = vmatprep.subr.mxu0 0.0
    %208 = vmatpush1.msra.mxu0 %v83
    %209 = vmatprep.subr.mxu0 0.0
    %210 = vmatpush1.msra.mxu0 0.0
    %211 = vmatprep.subr.mxu0 0.0
    %212 = vmatpush1.msra.mxu0 0.0
    %213 = vmatprep.subr.mxu0 0.0
    %214 = vmatpush1.msra.mxu0 0.0
    %215 = vmatprep.subr.mxu0 0.0
    %216 = vmatpush1.msra.mxu0 0.0
    %217 = vmatprep.subr.mxu0 0.0
    %218 = vmatpush1.msra.mxu0 0.0
    %219 = vmatprep.subr.mxu0 0.0
    %220 = vmatpush1.msra.mxu0 0.0
    %221 = vmatprep.subr.mxu0 0.0
    %222 = vmatpush1.msra.mxu0 0.0
    %223 = vmatprep.subr.mxu0 0.0
    %224 = vmatpush1.msra.mxu0 0.0
    %225 = vmatprep.subr.mxu0 0.0
    %226 = vmatpush1.msra.mxu0 0.0
    %227 = vmatprep.subr.mxu0 0.0
    %228 = vmatpush1.msra.mxu0 0.0
    %229 = vmatprep.subr.mxu0 0.0
    %230 = vmatpush1.msra.mxu0 0.0
    %231 = vmatprep.subr.mxu0 0.0
    %232 = vmatpush1.msra.mxu0 0.0
    %233 = vmatprep.subr.mxu0 0.0
    %234 = vmatpush1.msra.mxu0 0.0
    %235 = vmatprep.subr.mxu0 0.0
    %236 = vmatpush1.msra.mxu0 0.0
    %237 = vmatprep.subr.mxu0 0.0
    %238 = vmatpush1.msra.mxu0 0.0
    %239 = vmatprep.subr.mxu0 0.0
    %240 = vmatpush1.msra.mxu0 0.0
    %241 = vmatprep.mubr.f32.mxu0 0.0
    %242 = vmatmul.mubr.f32.gmra.mrb[0].mxu0 %v65
    %v243 = vpop.f32.mrb[0].mxu0
    %v244 = vadd.f32 %v174, %v243
    %v245 = vpop.f32.mrb[0].mxu0
    %246 = vdwg.mxu0
    %v247 = vadd.f32 %v67, %v244
    %248 = vst [vmem:[#allocation2] sm:$0xff] %v247
    // Predicated region
    $region38: #{tpu_custom_call.1} parent=1 // pred_check
      %p249 = pneg %p60
    $region39: #{tpu_custom_call.1} parent=1 // pred_check_branch
      %251 = sbr.rel (%p249) target = $region41
    $region40: #{tpu_custom_call.1} parent=1 // pred_region
      %v252 = vld [vmem:[#allocation2] sm:$0xff]
      %v253 = vld [vmem:[%s4] sm:$0x1]
      %v255 = vlaneseq
      %v256 = vshrl.u32 %v255, 7
      %v257 = vsub.s32 0, %v256
      %v258 = vrot.slane %v253, %v257
      %v260 = vadd.f32 %v252, %v258
      %261 = vst [vmem:[#allocation9] sm:$0xff] %v260
    $region41: #{tpu_custom_call.1} parent=1 // pred_fallthru
      _
    // Predicated region
    $region42: #{tpu_custom_call.1} parent=1 // pred_check
      _
    $region43: #{tpu_custom_call.1} parent=1 // pred_check_branch
      %263 = sbr.rel (0) target = $region45
    $region44: #{tpu_custom_call.1} parent=1 // pred_region
      %s265 = ssub.s32 128, 128
      %266 = vsyncadd [#allocation5], %s265
      %s268 = sshll.u32 [#allocation9], 4
      %s269 = int_to_ptr.vmem [resolvable:$true] %s268
      %271 = dma.vmem_to_hbm [thread:$0]  %s269, 128, %s5, [#allocation5]
    $region45: #{tpu_custom_call.1} parent=1 // pred_fallthru
      _
    // Predicated region
    $region46: #{tpu_custom_call.1} parent=1 // pred_check
      _
    $region47: #{tpu_custom_call.1} parent=1 // pred_check_branch
      %273 = sbr.rel (0) target = $region49
    $region48: #{tpu_custom_call.1} parent=1 // pred_region
      %274 = dma.done [#allocation5], 128
    $region49: #{tpu_custom_call.1} parent=1 // pred_fallthru
      _
    %275 = vsyncpa [#allocation4], 1
    %276 = vsyncpa [#allocation7], 1
    %277 = vsyncpa [#allocation5], 1

</llo_original>
